<compile_context>
chip_gen: v6e
topology: v6e:2x2x1
jax: 0.10.0
libtpu: 0.0.40
codegen_flags: <defaults>
</compile_context>

<pallas_src>
import jax
import jax.numpy as jnp
from jax import lax
from jax.experimental import pallas as pl
from jax.experimental.pallas import tpu as pltpu


def _round_up(n, m):
    return ((n + m - 1) // m) * m


def dense_net_kernel(x_ref, c_ref, w0_ref, wc_ref, b0_ref, w1_ref, b1_ref,
                     w2_ref, b2_ref, w3_ref, b3_ref, out_ref):
    # Activations are kept batch-on-lanes inside the kernel: (features, Bt).
    # Weights are PyTorch-style (out, in), stored bf16; accumulation is f32.
    f32 = jnp.float32
    bf16 = jnp.bfloat16
    # Contract the feature axis of (out, in) weights with the feature axis of the
    # (Bt, feat) input tiles -> (out, Bt).  Mosaic does the thin layout change in VMEM.
    dn = (((1,), (1,)), ((), ()))
    h = (lax.dot_general(w0_ref[...], x_ref[...].astype(bf16), dn,
                         preferred_element_type=f32)
         + lax.dot_general(wc_ref[...], c_ref[...].astype(bf16), dn,
                           preferred_element_type=f32)
         + b0_ref[...])                                   # b0 + bc pre-folded
    h = jnp.maximum(h, 0.0)
    h = jnp.dot(w1_ref[...], h.astype(bf16),
                preferred_element_type=f32) + b1_ref[...]
    h = jnp.maximum(h, 0.0)
    h = jnp.dot(w2_ref[...], h.astype(bf16),
                preferred_element_type=f32) + b2_ref[...]
    h = jnp.maximum(h, 0.0)
    out = jnp.dot(w3_ref[...], h.astype(bf16),
                  preferred_element_type=f32) + b3_ref[...]
    out_ref[...] = out.astype(out_ref.dtype)


def dense_net_forward(x, context, params, block_b=8192):
    """x: (B, input_dim), context: (B, context_features) -> (B, latent_dim).

    params: ((Wc, bc), (W0, b0), (W1, b1), (W2, b2), (W3, b3))
            with weights stored PyTorch-style as (out_features, in_features)
            and biases as (out_features,).
    """
    (wc, bc), (w0, b0), (w1, b1), (w2, b2), (w3, b3) = params
    assert block_b % 128 == 0, "block_b must be a multiple of 128 (lane tiling)"
    B, input_dim = x.shape
    ctx_dim = context.shape[1]
    h0, h1, h2 = w0.shape[0], w1.shape[0], w2.shape[0]
    latent_dim = w3.shape[0]

    # bf16 MXU operands (weights cast once here); biases pre-reshaped to (out, 1) f32.
    bf16 = jnp.bfloat16
    w0b, wcb = w0.astype(bf16), wc.astype(bf16)
    w1b, w2b, w3b = w1.astype(bf16), w2.astype(bf16), w3.astype(bf16)
    b0f = (b0 + bc).astype(jnp.float32)[:, None]          # layer-0 bias pre-folded
    b1c = b1.astype(jnp.float32)[:, None]
    b2c = b2.astype(jnp.float32)[:, None]
    b3c = b3.astype(jnp.float32)[:, None]

    # Batch tile: >=128, <=block_b, and (when B allows) >=2 tiles so v7x's two
    # TensorCores both get work along the "parallel" grid axis.
    bt = min(block_b, max(128, _round_up(-(-B // 2), 128)))
    b_pad = _round_up(B, bt)
    xp = x.astype(jnp.float32)
    cp = context.astype(jnp.float32)
    if b_pad != B:
        xp = jnp.pad(xp, ((0, b_pad - B), (0, 0)))
        cp = jnp.pad(cp, ((0, b_pad - B), (0, 0)))

    def resident(a):  # small weights/biases: constant block index -> VMEM-resident
        return pl.BlockSpec(a.shape, lambda i: (0, 0))

    flops = 2 * b_pad * (h0 * (input_dim + ctx_dim) + h1 * h0 + h2 * h1 + latent_dim * h2)
    bytes_accessed = 4 * b_pad * (input_dim + ctx_dim + latent_dim) + sum(
        int(a.size) * a.dtype.itemsize
        for a in (w0b, wcb, w1b, w2b, w3b, b0f, b1c, b2c, b3c))

    out_t = pl.pallas_call(
        dense_net_kernel,
        out_shape=jax.ShapeDtypeStruct((latent_dim, b_pad), jnp.float32),
        grid=(b_pad // bt,),
        in_specs=[
            pl.BlockSpec((bt, input_dim), lambda i: (i, 0)),   # x, streamed on batch
            pl.BlockSpec((bt, ctx_dim), lambda i: (i, 0)),     # context, streamed
            resident(w0b), resident(wcb), resident(b0f),
            resident(w1b), resident(b1c),
            resident(w2b), resident(b2c),
            resident(w3b), resident(b3c),
        ],
        out_specs=pl.BlockSpec((latent_dim, bt), lambda i: (0, i)),  # lane-dense store
        compiler_params=pltpu.CompilerParams(
            dimension_semantics=("parallel",),      # shard batch tiles across v7x TCs
            vmem_limit_bytes=48 * 1024 * 1024,      # headroom for large tiles; < v7x 64 MiB
        ),
        cost_estimate=pl.CostEstimate(flops=flops, transcendentals=0,
                                      bytes_accessed=bytes_accessed),
    )(xp, cp, w0b, wcb, b0f, w1b, b1c, w2b, b2c, w3b, b3c)

    return out_t[:, :B].T  # back to (B, latent_dim)


def xavier_uniform(key, fan_out, fan_in):
    # matches torch.nn.init.xavier_uniform_; stored PyTorch-style (out, in)
    bound = (6.0 / (fan_in + fan_out)) ** 0.5
    return jax.random.uniform(key, (fan_out, fan_in), jnp.float32, -bound, bound)


def init_params(key, input_dim, latent_dim, context_features, layers=(64, 64, 64)):
    ks = jax.random.split(key, 5)
    wc = xavier_uniform(ks[0], layers[0], context_features)   # context_layer
    bc = jnp.zeros((layers[0],), jnp.float32)
    w0 = xavier_uniform(ks[1], layers[0], input_dim)          # functions[0]
    b0 = jnp.zeros((layers[0],), jnp.float32)
    w1 = xavier_uniform(ks[2], layers[1], layers[0])          # functions[1]
    b1 = jnp.zeros((layers[1],), jnp.float32)
    w2 = xavier_uniform(ks[3], layers[2], layers[1])          # functions[2]
    b2 = jnp.zeros((layers[2],), jnp.float32)
    w3 = xavier_uniform(ks[4], latent_dim, layers[2])         # functions[3] (islast)
    b3 = jnp.zeros((latent_dim,), jnp.float32)
    return ((wc, bc), (w0, b0), (w1, b1), (w2, b2), (w3, b3))


def reference_forward(x, context, params):
    (wc, bc), (w0, b0), (w1, b1), (w2, b2), (w3, b3) = params
    h = x @ w0.T + b0 + (context @ wc.T + bc)
    h = jnp.maximum(h, 0.0)
    h = jnp.maximum(h @ w1.T + b1, 0.0)
    h = jnp.maximum(h @ w2.T + b2, 0.0)
    return h @ w3.T + b3


def reference_forward_bf16(x, context, params):
    # Emulates the kernel's numerics: bf16 matmul operands, f32 accumulate/elementwise.
    (wc, bc), (w0, b0), (w1, b1), (w2, b2), (w3, b3) = params
    bf16, f32 = jnp.bfloat16, jnp.float32

    def mm(a, w):
        return jnp.dot(a.astype(bf16), w.astype(bf16).T, preferred_element_type=f32)

    h = mm(x, w0) + mm(context, wc) + (b0 + bc)
    h = jnp.maximum(h, 0.0)
    h = jnp.maximum(mm(h, w1) + b1, 0.0)
    h = jnp.maximum(mm(h, w2) + b2, 0.0)
    return mm(h, w3) + b3


if __name__ == "__main__":
    B = 8
    input_dim = 6
    context_features = 2
    latent_dim = 1

    key = jax.random.PRNGKey(0)
    kx, kc, kp = jax.random.split(key, 3)
    x = jax.random.normal(kx, (B, input_dim), jnp.float32)
    context = jax.random.normal(kc, (B, context_features), jnp.float32)
    params = init_params(kp, input_dim, latent_dim, context_features)

    out = dense_net_forward(x, context, params)
    out = jax.block_until_ready(out)

    ref_bf = reference_forward_bf16(x, context, params)
    ref32 = reference_forward(x, context, params)
    assert out.shape == (B, latent_dim)
    # Kernel uses bf16 MXU operands with f32 accumulation: match the bf16-emulating
    # reference tightly and the f32 reference with a deliberate bf16-sized tolerance.
    assert jnp.allclose(out, ref_bf, atol=1e-2, rtol=1e-2), float(jnp.abs(out - ref_bf).max())
    assert jnp.allclose(out, ref32, atol=6e-2, rtol=6e-2), float(jnp.abs(out - ref32).max())

    # NOTE: for genuinely tiny batches like this demo, plain XLA fusion would beat
    # the pallas_call launch overhead; the kernel targets large B.
    print("KERNEL_OK")
</pallas_src>

<mosaic_0001>
module attributes {stable_mosaic.version = 11 : i64} {
  func.func @dense_net_kernel(%arg0: i32, %arg1: memref<128x6xf32, #tpu.memory_space<vmem>>, %arg2: memref<128x2xf32, #tpu.memory_space<vmem>>, %arg3: memref<64x6xbf16, #tpu.memory_space<vmem>>, %arg4: memref<64x2xbf16, #tpu.memory_space<vmem>>, %arg5: memref<64x1xf32, #tpu.memory_space<vmem>>, %arg6: memref<64x64xbf16, #tpu.memory_space<vmem>>, %arg7: memref<64x1xf32, #tpu.memory_space<vmem>>, %arg8: memref<64x64xbf16, #tpu.memory_space<vmem>>, %arg9: memref<64x1xf32, #tpu.memory_space<vmem>>, %arg10: memref<1x64xbf16, #tpu.memory_space<vmem>>, %arg11: memref<1x1xf32, #tpu.memory_space<vmem>>, %arg12: memref<1x128xf32, #tpu.memory_space<vmem>>) attributes {dimension_semantics = [#tpu.dimension_semantics<parallel>], iteration_bounds = array<i64: 1>, scalar_prefetch = 0 : i64, scratch_operands = 0 : i64, tpu.core_type = #tpu.core_type<tc>, window_params = [{transform_indices = @transform_0, window_bounds = array<i64: 128, 6>}, {transform_indices = @transform_1, window_bounds = array<i64: 128, 2>}, {pipeline_mode = #tpu.pipeline_mode<synchronous>, transform_indices = @transform_2, window_bounds = array<i64: 64, 6>}, {pipeline_mode = #tpu.pipeline_mode<synchronous>, transform_indices = @transform_3, window_bounds = array<i64: 64, 2>}, {pipeline_mode = #tpu.pipeline_mode<synchronous>, transform_indices = @transform_4, window_bounds = array<i64: 64, 1>}, {pipeline_mode = #tpu.pipeline_mode<synchronous>, transform_indices = @transform_5, window_bounds = array<i64: 64, 64>}, {pipeline_mode = #tpu.pipeline_mode<synchronous>, transform_indices = @transform_6, window_bounds = array<i64: 64, 1>}, {pipeline_mode = #tpu.pipeline_mode<synchronous>, transform_indices = @transform_7, window_bounds = array<i64: 64, 64>}, {pipeline_mode = #tpu.pipeline_mode<synchronous>, transform_indices = @transform_8, window_bounds = array<i64: 64, 1>}, {pipeline_mode = #tpu.pipeline_mode<synchronous>, transform_indices = @transform_9, window_bounds = array<i64: 1, 64>}, {pipeline_mode = #tpu.pipeline_mode<synchronous>, transform_indices = @transform_10, window_bounds = array<i64: 1, 1>}, {transform_indices = @transform_11, window_bounds = array<i64: 1, 128>}]} {
    %c0 = arith.constant 0 : index
    %c0_0 = arith.constant 0 : index
    %0 = vector.load %arg3[%c0, %c0_0] : memref<64x6xbf16, #tpu.memory_space<vmem>>, vector<64x6xbf16>
    %c0_1 = arith.constant 0 : index
    %c0_2 = arith.constant 0 : index
    %1 = vector.load %arg1[%c0_1, %c0_2] : memref<128x6xf32, #tpu.memory_space<vmem>>, vector<128x6xf32>
    %2 = arith.truncf %1 : vector<128x6xf32> to vector<128x6xbf16>
    %cst = arith.constant dense<0.000000e+00> : vector<64x128xf32>
    %3 = tpu.matmul %0, %2, %cst {dimension_numbers = #tpu.dot_dimension_numbers<[1], [1], [0], [0], [0, 0, 1, 0], [], []>} : vector<64x6xbf16>, vector<128x6xbf16>, vector<64x128xf32> -> vector<64x128xf32>
    %c0_3 = arith.constant 0 : index
    %c0_4 = arith.constant 0 : index
    %4 = vector.load %arg4[%c0_3, %c0_4] : memref<64x2xbf16, #tpu.memory_space<vmem>>, vector<64x2xbf16>
    %c0_5 = arith.constant 0 : index
    %c0_6 = arith.constant 0 : index
    %5 = vector.load %arg2[%c0_5, %c0_6] : memref<128x2xf32, #tpu.memory_space<vmem>>, vector<128x2xf32>
    %6 = arith.truncf %5 : vector<128x2xf32> to vector<128x2xbf16>
    %cst_7 = arith.constant dense<0.000000e+00> : vector<64x128xf32>
    %7 = tpu.matmul %4, %6, %cst_7 {dimension_numbers = #tpu.dot_dimension_numbers<[1], [1], [0], [0], [0, 0, 1, 0], [], []>} : vector<64x2xbf16>, vector<128x2xbf16>, vector<64x128xf32> -> vector<64x128xf32>
    %8 = arith.addf %3, %7 : vector<64x128xf32>
    %c0_8 = arith.constant 0 : index
    %c0_9 = arith.constant 0 : index
    %9 = vector.load %arg5[%c0_8, %c0_9] : memref<64x1xf32, #tpu.memory_space<vmem>>, vector<64x1xf32>
    %10 = vector.broadcast %9 : vector<64x1xf32> to vector<64x128xf32>
    %11 = arith.addf %8, %10 : vector<64x128xf32>
    %cst_10 = arith.constant 0.000000e+00 : f32
    %12 = vector.broadcast %cst_10 : f32 to vector<64x128xf32>
    %13 = arith.maximumf %11, %12 : vector<64x128xf32>
    %c0_11 = arith.constant 0 : index
    %c0_12 = arith.constant 0 : index
    %14 = vector.load %arg6[%c0_11, %c0_12] : memref<64x64xbf16, #tpu.memory_space<vmem>>, vector<64x64xbf16>
    %15 = arith.truncf %13 : vector<64x128xf32> to vector<64x128xbf16>
    %cst_13 = arith.constant dense<0.000000e+00> : vector<64x128xf32>
    %16 = tpu.matmul %14, %15, %cst_13 {dimension_numbers = #tpu.dot_dimension_numbers<[1], [0], [0], [1], [0, 0, 1, 1], [], []>} : vector<64x64xbf16>, vector<64x128xbf16>, vector<64x128xf32> -> vector<64x128xf32>
    %c0_14 = arith.constant 0 : index
    %c0_15 = arith.constant 0 : index
    %17 = vector.load %arg7[%c0_14, %c0_15] : memref<64x1xf32, #tpu.memory_space<vmem>>, vector<64x1xf32>
    %18 = vector.broadcast %17 : vector<64x1xf32> to vector<64x128xf32>
    %19 = arith.addf %16, %18 : vector<64x128xf32>
    %cst_16 = arith.constant 0.000000e+00 : f32
    %20 = vector.broadcast %cst_16 : f32 to vector<64x128xf32>
    %21 = arith.maximumf %19, %20 : vector<64x128xf32>
    %c0_17 = arith.constant 0 : index
    %c0_18 = arith.constant 0 : index
    %22 = vector.load %arg8[%c0_17, %c0_18] : memref<64x64xbf16, #tpu.memory_space<vmem>>, vector<64x64xbf16>
    %23 = arith.truncf %21 : vector<64x128xf32> to vector<64x128xbf16>
    %cst_19 = arith.constant dense<0.000000e+00> : vector<64x128xf32>
    %24 = tpu.matmul %22, %23, %cst_19 {dimension_numbers = #tpu.dot_dimension_numbers<[1], [0], [0], [1], [0, 0, 1, 1], [], []>} : vector<64x64xbf16>, vector<64x128xbf16>, vector<64x128xf32> -> vector<64x128xf32>
    %c0_20 = arith.constant 0 : index
    %c0_21 = arith.constant 0 : index
    %25 = vector.load %arg9[%c0_20, %c0_21] : memref<64x1xf32, #tpu.memory_space<vmem>>, vector<64x1xf32>
    %26 = vector.broadcast %25 : vector<64x1xf32> to vector<64x128xf32>
    %27 = arith.addf %24, %26 : vector<64x128xf32>
    %cst_22 = arith.constant 0.000000e+00 : f32
    %28 = vector.broadcast %cst_22 : f32 to vector<64x128xf32>
    %29 = arith.maximumf %27, %28 : vector<64x128xf32>
    %c0_23 = arith.constant 0 : index
    %c0_24 = arith.constant 0 : index
    %30 = vector.load %arg10[%c0_23, %c0_24] : memref<1x64xbf16, #tpu.memory_space<vmem>>, vector<1x64xbf16>
    %31 = arith.truncf %29 : vector<64x128xf32> to vector<64x128xbf16>
    %cst_25 = arith.constant dense<0.000000e+00> : vector<1x128xf32>
    %32 = tpu.matmul %30, %31, %cst_25 {dimension_numbers = #tpu.dot_dimension_numbers<[1], [0], [0], [1], [0, 0, 1, 1], [], []>} : vector<1x64xbf16>, vector<64x128xbf16>, vector<1x128xf32> -> vector<1x128xf32>
    %c0_26 = arith.constant 0 : index
    %c0_27 = arith.constant 0 : index
    %33 = vector.load %arg11[%c0_26, %c0_27] : memref<1x1xf32, #tpu.memory_space<vmem>>, vector<1x1xf32>
    %34 = vector.broadcast %33 : vector<1x1xf32> to vector<1x128xf32>
    %35 = arith.addf %32, %34 : vector<1x128xf32>
    %c0_28 = arith.constant 0 : index
    %c0_29 = arith.constant 0 : index
    %36 = vector.load %arg12[%c0_28, %c0_29] : memref<1x128xf32, #tpu.memory_space<vmem>>, vector<1x128xf32>
    tpu.vector_store %arg12[%c0_28, %c0_29], %35 {strides = array<i32>} : memref<1x128xf32, #tpu.memory_space<vmem>>, vector<1x128xf32>,
    return
  }
  func.func @transform_0(%arg0: i32) -> (i32, i32) {
    %c0_i32 = arith.constant 0 : i32
    %c0_i32_0 = arith.constant 0 : i32
    return %arg0, %c0_i32 : i32, i32
  }
  func.func @transform_1(%arg0: i32) -> (i32, i32) {
    %c0_i32 = arith.constant 0 : i32
    %c0_i32_0 = arith.constant 0 : i32
    return %arg0, %c0_i32 : i32, i32
  }
  func.func @transform_2(%arg0: i32) -> (i32, i32) {
    %c0_i32 = arith.constant 0 : i32
    %c0_i32_0 = arith.constant 0 : i32
    %c0_i32_1 = arith.constant 0 : i32
    return %c0_i32, %c0_i32_0 : i32, i32
  }
  func.func @transform_3(%arg0: i32) -> (i32, i32) {
    %c0_i32 = arith.constant 0 : i32
    %c0_i32_0 = arith.constant 0 : i32
    %c0_i32_1 = arith.constant 0 : i32
    return %c0_i32, %c0_i32_0 : i32, i32
  }
  func.func @transform_4(%arg0: i32) -> (i32, i32) {
    %c0_i32 = arith.constant 0 : i32
    %c0_i32_0 = arith.constant 0 : i32
    %c0_i32_1 = arith.constant 0 : i32
    return %c0_i32, %c0_i32_0 : i32, i32
  }
  func.func @transform_5(%arg0: i32) -> (i32, i32) {
    %c0_i32 = arith.constant 0 : i32
    %c0_i32_0 = arith.constant 0 : i32
    %c0_i32_1 = arith.constant 0 : i32
    return %c0_i32, %c0_i32_0 : i32, i32
  }
  func.func @transform_6(%arg0: i32) -> (i32, i32) {
    %c0_i32 = arith.constant 0 : i32
    %c0_i32_0 = arith.constant 0 : i32
    %c0_i32_1 = arith.constant 0 : i32
    return %c0_i32, %c0_i32_0 : i32, i32
  }
  func.func @transform_7(%arg0: i32) -> (i32, i32) {
    %c0_i32 = arith.constant 0 : i32
    %c0_i32_0 = arith.constant 0 : i32
    %c0_i32_1 = arith.constant 0 : i32
    return %c0_i32, %c0_i32_0 : i32, i32
  }
  func.func @transform_8(%arg0: i32) -> (i32, i32) {
    %c0_i32 = arith.constant 0 : i32
    %c0_i32_0 = arith.constant 0 : i32
    %c0_i32_1 = arith.constant 0 : i32
    return %c0_i32, %c0_i32_0 : i32, i32
  }
  func.func @transform_9(%arg0: i32) -> (i32, i32) {
    %c0_i32 = arith.constant 0 : i32
    %c0_i32_0 = arith.constant 0 : i32
    %c0_i32_1 = arith.constant 0 : i32
    return %c0_i32, %c0_i32_0 : i32, i32
  }
  func.func @transform_10(%arg0: i32) -> (i32, i32) {
    %c0_i32 = arith.constant 0 : i32
    %c0_i32_0 = arith.constant 0 : i32
    %c0_i32_1 = arith.constant 0 : i32
    return %c0_i32, %c0_i32_0 : i32, i32
  }
  func.func @transform_11(%arg0: i32) -> (i32, i32) {
    %c0_i32 = arith.constant 0 : i32
    %c0_i32_0 = arith.constant 0 : i32
    return %c0_i32, %arg0 : i32, i32
  }
}

</mosaic_0001>

<llo_original>
// kernel: tpu_custom_call.1
$region0: #{tpu_custom_call.1}
  #allocation0 [shape = 'u32[]', space=smem, size = 0x4, offset = 0x4, fixed_abs, tag = 'smem constant byte address 0x4 - core index']
  #allocation1 [shape = 'u32[144,128]{1,0:T(1,128)}', space=vmem, size = 0x12000, scoped, tag = 'internal scratch']
  #allocation2 [shape = 'f32[1,1]{1,0:T(1,128)S(1)}', space=vmem, size = 0x200, scoped, tag = 'scoped memory for tpu_custom_call.1']
  %s0 = inlined_call_operand.vmem [shape: f32[128,6], index: 0, kind: input, shape index: {}]
  %s1 = inlined_call_operand.vmem [shape: f32[128,2], index: 1, kind: input, shape index: {}]
  %s2 = inlined_call_operand.vmem [shape: bf16[64,6], index: 2, kind: input, shape index: {}]
  %s3 = inlined_call_operand.vmem [shape: bf16[64,2], index: 3, kind: input, shape index: {}]
  %s4 = inlined_call_operand.vmem [shape: f32[64,1], index: 4, kind: input, shape index: {}]
  %s5 = inlined_call_operand.vmem [shape: bf16[64,64], index: 5, kind: input, shape index: {}]
  %s6 = inlined_call_operand.vmem [shape: f32[64,1], index: 6, kind: input, shape index: {}]
  %s7 = inlined_call_operand.vmem [shape: bf16[64,64], index: 7, kind: input, shape index: {}]
  %s8 = inlined_call_operand.vmem [shape: f32[64,1], index: 8, kind: input, shape index: {}]
  %s9 = inlined_call_operand.vmem [shape: bf16[1,64], index: 9, kind: input, shape index: {}]
  %s10 = inlined_call_operand.<no memory space> [shape: f32[1,1], index: 10, kind: input, shape index: {}]
  %s11 = inlined_call_operand.hbm [shape: f32[1,128], index: 11, kind: output, shape index: {}]
  %s12 = sld [smem:[#allocation0]]
  $region54: #{tpu_custom_call.1} parent=0
    _
  %s14 = ssub.s32 1, %s12
  %s15 = scalar_select 0, %s14, %s12
  %v16 = vstv %s10
  %17 = vst [vmem:[#allocation2] sm:$0x1] %v16
  $region1: #{tpu_custom_call.1} parent=0
    #allocation3 [shape = 'u8[512]{0}', space=vmem, size = 0x400, scoped, tag = 'output window, operand 0, single buffered']
    #allocation4 [shape = 's32[1]{0}', space=sflag, size = 0x4, scoped, tag = 'scoped memory for tpu_custom_call.1']
    %18 = vsyncpa [#allocation4], 0
    // Predicated region
    $region2: #{tpu_custom_call.1} parent=1 // pred_check
      _
    $region3: #{tpu_custom_call.1} parent=1 // pred_check_branch
      %20 = sbr.rel (0) target = $region5
    $region4: #{tpu_custom_call.1} parent=1 // pred_region
      _
    $region5: #{tpu_custom_call.1} parent=1 // pred_fallthru
      _
    // Predicated region
    $region6: #{tpu_custom_call.1} parent=1 // pred_check
      _
    $region7: #{tpu_custom_call.1} parent=1 // pred_check_branch
      %22 = sbr.rel (0) target = $region9
    $region8: #{tpu_custom_call.1} parent=1 // pred_region
      _
    $region9: #{tpu_custom_call.1} parent=1 // pred_fallthru
      _
    // Predicated region
    $region10: #{tpu_custom_call.1} parent=1 // pred_check
      _
    $region11: #{tpu_custom_call.1} parent=1 // pred_check_branch
      %24 = sbr.rel (0) target = $region13
    $region12: #{tpu_custom_call.1} parent=1 // pred_region
      _
    $region13: #{tpu_custom_call.1} parent=1 // pred_fallthru
      _
    // Predicated region
    $region14: #{tpu_custom_call.1} parent=1 // pred_check
      _
    $region15: #{tpu_custom_call.1} parent=1 // pred_check_branch
      %26 = sbr.rel (0) target = $region17
    $region16: #{tpu_custom_call.1} parent=1 // pred_region
      _
    $region17: #{tpu_custom_call.1} parent=1 // pred_fallthru
      _
    // Predicated region
    $region18: #{tpu_custom_call.1} parent=1 // pred_check
      _
    $region19: #{tpu_custom_call.1} parent=1 // pred_check_branch
      %28 = sbr.rel (0) target = $region21
    $region20: #{tpu_custom_call.1} parent=1 // pred_region
      _
    $region21: #{tpu_custom_call.1} parent=1 // pred_fallthru
      _
    // Predicated region
    $region22: #{tpu_custom_call.1} parent=1 // pred_check
      _
    $region23: #{tpu_custom_call.1} parent=1 // pred_check_branch
      %30 = sbr.rel (0) target = $region25
    $region24: #{tpu_custom_call.1} parent=1 // pred_region
      _
    $region25: #{tpu_custom_call.1} parent=1 // pred_fallthru
      _
    // Predicated region
    $region26: #{tpu_custom_call.1} parent=1 // pred_check
      _
    $region27: #{tpu_custom_call.1} parent=1 // pred_check_branch
      %32 = sbr.rel (0) target = $region29
    $region28: #{tpu_custom_call.1} parent=1 // pred_region
      _
    $region29: #{tpu_custom_call.1} parent=1 // pred_fallthru
      _
    // Predicated region
    $region30: #{tpu_custom_call.1} parent=1 // pred_check
      _
    $region31: #{tpu_custom_call.1} parent=1 // pred_check_branch
      %34 = sbr.rel (0) target = $region33
    $region32: #{tpu_custom_call.1} parent=1 // pred_region
      _
    $region33: #{tpu_custom_call.1} parent=1 // pred_fallthru
      _
    // Predicated region
    $region34: #{tpu_custom_call.1} parent=1 // pred_check
      _
    $region35: #{tpu_custom_call.1} parent=1 // pred_check_branch
      %36 = sbr.rel (0) target = $region37
    $region36: #{tpu_custom_call.1} parent=1 // pred_region
      _
    $region37: #{tpu_custom_call.1} parent=1 // pred_fallthru
      _
    // Predicated region
    $region38: #{tpu_custom_call.1} parent=1 // pred_check
      _
    $region39: #{tpu_custom_call.1} parent=1 // pred_check_branch
      %38 = sbr.rel (0) target = $region41
    $region40: #{tpu_custom_call.1} parent=1 // pred_region
      _
    $region41: #{tpu_custom_call.1} parent=1 // pred_fallthru
      _
    // Predicated region
    $region42: #{tpu_custom_call.1} parent=1 // pred_check
      _
    $region43: #{tpu_custom_call.1} parent=1 // pred_check_branch
      %40 = sbr.rel (0) target = $region45
    $region44: #{tpu_custom_call.1} parent=1 // pred_region
      _
    $region45: #{tpu_custom_call.1} parent=1 // pred_fallthru
      _
    %v42 = vld [vmem:[%s2] sm:$0xf]
    %v43 = vld [vmem:[%s2 + $0x4] sm:$0xf]
    %v44 = vld [vmem:[%s2 + $0x8] sm:$0xf]
    %v45 = vld [vmem:[%s2 + $0xc] sm:$0xf]
    %v46 = vld [vmem:[%s2 + $0x10] sm:$0xf]
    %v47 = vld [vmem:[%s2 + $0x14] sm:$0xf]
    %v48 = vld [vmem:[%s2 + $0x18] sm:$0xf]
    %v49 = vld [vmem:[%s2 + $0x1c] sm:$0xf]
    %v50 = vld [vmem:[%s0] sm:$0xff]
    %v51 = vld [vmem:[%s0 + $0x8] sm:$0xff]
    %v52 = vld [vmem:[%s0 + $0x10] sm:$0xff]
    %v53 = vld [vmem:[%s0 + $0x18] sm:$0xff]
    %v54 = vld [vmem:[%s0 + $0x20] sm:$0xff]
    %v55 = vld [vmem:[%s0 + $0x28] sm:$0xff]
    %v56 = vld [vmem:[%s0 + $0x30] sm:$0xff]
    %v57 = vld [vmem:[%s0 + $0x38] sm:$0xff]
    %v58 = vld [vmem:[%s0 + $0x40] sm:$0xff]
    %v59 = vld [vmem:[%s0 + $0x48] sm:$0xff]
    %v60 = vld [vmem:[%s0 + $0x50] sm:$0xff]
    %v61 = vld [vmem:[%s0 + $0x58] sm:$0xff]
    %v62 = vld [vmem:[%s0 + $0x60] sm:$0xff]
    %v63 = vld [vmem:[%s0 + $0x68] sm:$0xff]
    %v64 = vld [vmem:[%s0 + $0x70] sm:$0xff]
    %v65 = vld [vmem:[%s0 + $0x78] sm:$0xff]
    %v66 = vpack.c.bf16 %v51, %v50
    %v67 = vpack.c.bf16 %v53, %v52
    %v68 = vpack.c.bf16 %v55, %v54
    %v69 = vpack.c.bf16 %v57, %v56
    %v70 = vpack.c.bf16 %v59, %v58
    %v71 = vpack.c.bf16 %v61, %v60
    %v72 = vpack.c.bf16 %v63, %v62
    %v73 = vpack.c.bf16 %v65, %v64
    %v74 = vld [vmem:[%s3] sm:$0xf]
    %v75 = vld [vmem:[%s3 + $0x4] sm:$0xf]
    %v76 = vld [vmem:[%s3 + $0x8] sm:$0xf]
    %v77 = vld [vmem:[%s3 + $0xc] sm:$0xf]
    %v78 = vld [vmem:[%s3 + $0x10] sm:$0xf]
    %v79 = vld [vmem:[%s3 + $0x14] sm:$0xf]
    %v80 = vld [vmem:[%s3 + $0x18] sm:$0xf]
    %v81 = vld [vmem:[%s3 + $0x1c] sm:$0xf]
    %v82 = vld [vmem:[%s1] sm:$0xff]
    %v83 = vld [vmem:[%s1 + $0x8] sm:$0xff]
    %v84 = vld [vmem:[%s1 + $0x10] sm:$0xff]
    %v85 = vld [vmem:[%s1 + $0x18] sm:$0xff]
    %v86 = vld [vmem:[%s1 + $0x20] sm:$0xff]
    %v87 = vld [vmem:[%s1 + $0x28] sm:$0xff]
    %v88 = vld [vmem:[%s1 + $0x30] sm:$0xff]
    %v89 = vld [vmem:[%s1 + $0x38] sm:$0xff]
    %v90 = vld [vmem:[%s1 + $0x40] sm:$0xff]
    %v91 = vld [vmem:[%s1 + $0x48] sm:$0xff]
    %v92 = vld [vmem:[%s1 + $0x50] sm:$0xff]
    %v93 = vld [vmem:[%s1 + $0x58] sm:$0xff]
    %v94 = vld [vmem:[%s1 + $0x60] sm:$0xff]
    %v95 = vld [vmem:[%s1 + $0x68] sm:$0xff]
    %v96 = vld [vmem:[%s1 + $0x70] sm:$0xff]
    %v97 = vld [vmem:[%s1 + $0x78] sm:$0xff]
    %v98 = vpack.c.bf16 %v83, %v82
    %v99 = vpack.c.bf16 %v85, %v84
    %v100 = vpack.c.bf16 %v87, %v86
    %v101 = vpack.c.bf16 %v89, %v88
    %v102 = vpack.c.bf16 %v91, %v90
    %v103 = vpack.c.bf16 %v93, %v92
    %v104 = vpack.c.bf16 %v95, %v94
    %v105 = vpack.c.bf16 %v97, %v96
    %v114 = vunpack.c.l.b16 %v74
    %v115 = vunpack.c.l.b16 %v75
    %v116 = vunpack.c.l.b16 %v76
    %v117 = vunpack.c.l.b16 %v77
    %v118 = vunpack.c.l.b16 %v78
    %v119 = vunpack.c.l.b16 %v79
    %v120 = vunpack.c.l.b16 %v80
    %v121 = vunpack.c.l.b16 %v81
    %v122 = vpack.c.b16 %v115, %v114
    %v123 = vpack.c.b16 %v117, %v116
    %v124 = vpack.c.b16 %v119, %v118
    %v125 = vpack.c.b16 %v121, %v120
    %vm126 = vcmask 15360
    %v128 = vsel %vm126, %v122, 0
    %v131 = vsel %vm126, %v123, 0
    %v134 = vsel %vm126, %v124, 0
    %v137 = vsel %vm126, %v125, 0
    %v140 = vsel %vm126, %v98, 0
    %v143 = vsel %vm126, %v99, 0
    %v146 = vsel %vm126, %v100, 0
    %v149 = vsel %vm126, %v101, 0
    %v152 = vsel %vm126, %v102, 0
    %v155 = vsel %vm126, %v103, 0
    %v158 = vsel %vm126, %v104, 0
    %v161 = vsel %vm126, %v105, 0
    %163 = vmatprep.subr.bf16.mxu0 0
    %164 = vmatpush1.bf16.xpose.msra.mxu0 %v161
    %165 = vmatprep.subr.bf16.mxu0 0
    %166 = vmatpush1.bf16.xpose.msra.mxu0 %v158
    %167 = vmatprep.subr.bf16.mxu0 0
    %168 = vmatpush1.bf16.xpose.msra.mxu0 %v155
    %169 = vmatprep.subr.bf16.mxu0 0
    %170 = vmatpush1.bf16.xpose.msra.mxu0 %v152
    %171 = vmatprep.subr.bf16.mxu0 0
    %172 = vmatpush1.bf16.xpose.msra.mxu0 %v149
    %173 = vmatprep.subr.bf16.mxu0 0
    %174 = vmatpush1.bf16.xpose.msra.mxu0 %v146
    %175 = vmatprep.subr.bf16.mxu0 0
    %176 = vmatpush1.bf16.xpose.msra.mxu0 %v143
    %177 = vmatprep.subr.bf16.mxu0 0
    %178 = vmatpush1.bf16.xpose.msra.mxu0 %v140
    %179 = vmatprep.subr.bf16.mxu0 0
    %180 = vmatpush2.bf16.xpose.msra.mxu0 0
    %181 = vmatprep.subr.bf16.mxu0 0
    %182 = vmatpush2.bf16.xpose.msra.mxu0 0
    %183 = vmatprep.subr.bf16.mxu0 0
    %184 = vmatpush2.bf16.xpose.msra.mxu0 0
    %185 = vmatprep.subr.bf16.mxu0 0
    %186 = vmatpush2.bf16.xpose.msra.mxu0 0
    %187 = vmatprep.subr.bf16.mxu0 0
    %188 = vmatpush2.bf16.xpose.msra.mxu0 0
    %189 = vmatprep.subr.bf16.mxu0 0
    %190 = vmatpush2.bf16.xpose.msra.mxu0 0
    %191 = vmatprep.subr.bf16.mxu0 0
    %192 = vmatpush2.bf16.xpose.msra.mxu0 0
    %193 = vmatprep.subr.bf16.mxu0 0
    %194 = vmatpush2.bf16.xpose.msra.mxu0 0
    %195 = vmatprep.mubr.bf16.mxu0 0
    %196 = vmatmul.mubr.bf16.gmra.mxu0 %v128
    %v197 = vpop.f32.mrf.mxu0
    %v198 = vadd.f32 0.0, %v197
    %v199 = vpop.f32.mrf.mxu0
    %v200 = vpop.f32.mrf.mxu0
    %v201 = vadd.f32 0.0, %v200
    %v202 = vpop.f32.mrf.mxu0
    %203 = vmatprep.mubr.bf16.mxu0 0
    %204 = vmatmul.mubr.bf16.gmra.mxu0 %v131
    %v205 = vpop.f32.mrf.mxu0
    %v206 = vadd.f32 0.0, %v205
    %v207 = vpop.f32.mrf.mxu0
    %v208 = vpop.f32.mrf.mxu0
    %v209 = vadd.f32 0.0, %v208
    %v210 = vpop.f32.mrf.mxu0
    %211 = vmatprep.mubr.bf16.mxu0 0
    %212 = vmatmul.mubr.bf16.gmra.mxu0 %v134
    %v213 = vpop.f32.mrf.mxu0
    %v214 = vadd.f32 0.0, %v213
    %v215 = vpop.f32.mrf.mxu0
    %v216 = vpop.f32.mrf.mxu0
    %v217 = vadd.f32 0.0, %v216
    %v218 = vpop.f32.mrf.mxu0
    %219 = vmatprep.mubr.bf16.mxu0 0
    %220 = vmatmul.mubr.bf16.gmra.mxu0 %v137
    %v221 = vpop.f32.mrf.mxu0
    %v222 = vadd.f32 0.0, %v221
    %v223 = vpop.f32.mrf.mxu0
    %v224 = vpop.f32.mrf.mxu0
    %v225 = vadd.f32 0.0, %v224
    %v226 = vpop.f32.mrf.mxu0
    %227 = vdwg.mxu0
    %v236 = vunpack.c.l.b16 %v42
    %v237 = vunpack.c.l.b16 %v43
    %v238 = vunpack.c.l.b16 %v44
    %v239 = vunpack.c.l.b16 %v45
    %v240 = vunpack.c.l.b16 %v46
    %v241 = vunpack.c.l.b16 %v47
    %v242 = vunpack.c.l.b16 %v48
    %v243 = vunpack.c.l.b16 %v49
    %v244 = vpack.c.b16 %v237, %v236
    %v245 = vpack.c.b16 %v239, %v238
    %v246 = vpack.c.b16 %v241, %v240
    %v247 = vpack.c.b16 %v243, %v242
    %vm248 = vcmask 48128
    %v250 = vsel %vm248, %v244, 0
    %v253 = vsel %vm248, %v245, 0
    %v256 = vsel %vm248, %v246, 0
    %v259 = vsel %vm248, %v247, 0
    %v262 = vsel %vm248, %v66, 0
    %v265 = vsel %vm248, %v67, 0
    %v268 = vsel %vm248, %v68, 0
    %v271 = vsel %vm248, %v69, 0
    %v274 = vsel %vm248, %v70, 0
    %v277 = vsel %vm248, %v71, 0
    %v280 = vsel %vm248, %v72, 0
    %v283 = vsel %vm248, %v73, 0
    %285 = vmatprep.subr.bf16.mxu0 0
    %286 = vmatpush1.bf16.xpose.msra.mxu0 %v283
    %287 = vmatprep.subr.bf16.mxu0 0
    %288 = vmatpush1.bf16.xpose.msra.mxu0 %v280
    %289 = vmatprep.subr.bf16.mxu0 0
    %290 = vmatpush1.bf16.xpose.msra.mxu0 %v277
    %291 = vmatprep.subr.bf16.mxu0 0
    %292 = vmatpush1.bf16.xpose.msra.mxu0 %v274
    %293 = vmatprep.subr.bf16.mxu0 0
    %294 = vmatpush1.bf16.xpose.msra.mxu0 %v271
    %295 = vmatprep.subr.bf16.mxu0 0
    %296 = vmatpush1.bf16.xpose.msra.mxu0 %v268
    %297 = vmatprep.subr.bf16.mxu0 0
    %298 = vmatpush1.bf16.xpose.msra.mxu0 %v265
    %299 = vmatprep.subr.bf16.mxu0 0
    %300 = vmatpush1.bf16.xpose.msra.mxu0 %v262
    %301 = vmatprep.subr.bf16.mxu0 0
    %302 = vmatpush2.bf16.xpose.msra.mxu0 0
    %303 = vmatprep.subr.bf16.mxu0 0
    %304 = vmatpush2.bf16.xpose.msra.mxu0 0
    %305 = vmatprep.subr.bf16.mxu0 0
    %306 = vmatpush2.bf16.xpose.msra.mxu0 0
    %307 = vmatprep.subr.bf16.mxu0 0
    %308 = vmatpush2.bf16.xpose.msra.mxu0 0
    %309 = vmatprep.subr.bf16.mxu0 0
    %310 = vmatpush2.bf16.xpose.msra.mxu0 0
    %311 = vmatprep.subr.bf16.mxu0 0
    %312 = vmatpush2.bf16.xpose.msra.mxu0 0
    %313 = vmatprep.subr.bf16.mxu0 0
    %314 = vmatpush2.bf16.xpose.msra.mxu0 0
    %315 = vmatprep.subr.bf16.mxu0 0
    %316 = vmatpush2.bf16.xpose.msra.mxu0 0
    %317 = vmatprep.mubr.bf16.mxu0 0
    %318 = vmatmul.mubr.bf16.gmra.mxu0 %v250
    %v319 = vpop.f32.mrf.mxu0
    %v320 = vadd.f32 %v198, %v319
    %v321 = vpop.f32.mrf.mxu0
    %v322 = vpop.f32.mrf.mxu0
    %v323 = vadd.f32 %v201, %v322
    %v324 = vpop.f32.mrf.mxu0
    %325 = vmatprep.mubr.bf16.mxu0 0
    %326 = vmatmul.mubr.bf16.gmra.mxu0 %v253
    %v327 = vpop.f32.mrf.mxu0
    %v328 = vadd.f32 %v206, %v327
    %v329 = vpop.f32.mrf.mxu0
    %v330 = vpop.f32.mrf.mxu0
    %v331 = vadd.f32 %v209, %v330
    %v332 = vpop.f32.mrf.mxu0
    %333 = vmatprep.mubr.bf16.mxu0 0
    %334 = vmatmul.mubr.bf16.gmra.mxu0 %v256
    %v335 = vpop.f32.mrf.mxu0
    %v336 = vadd.f32 %v214, %v335
    %v337 = vpop.f32.mrf.mxu0
    %v338 = vpop.f32.mrf.mxu0
    %v339 = vadd.f32 %v217, %v338
    %v340 = vpop.f32.mrf.mxu0
    %341 = vmatprep.mubr.bf16.mxu0 0
    %342 = vmatmul.mubr.bf16.gmra.mxu0 %v259
    %v343 = vpop.f32.mrf.mxu0
    %v344 = vadd.f32 %v222, %v343
    %v345 = vpop.f32.mrf.mxu0
    %v346 = vpop.f32.mrf.mxu0
    %v347 = vadd.f32 %v225, %v346
    %v348 = vpop.f32.mrf.mxu0
    %349 = vdwg.mxu0
    %v350 = vld [vmem:[%s4] sm:$0xff]
    %v351 = vld [vmem:[%s4 + $0x8] sm:$0xff]
    %v352 = vld [vmem:[%s4 + $0x10] sm:$0xff]
    %v353 = vld [vmem:[%s4 + $0x18] sm:$0xff]
    %v354 = vld [vmem:[%s4 + $0x20] sm:$0xff]
    %v355 = vld [vmem:[%s4 + $0x28] sm:$0xff]
    %v356 = vld [vmem:[%s4 + $0x30] sm:$0xff]
    %v357 = vld [vmem:[%s4 + $0x38] sm:$0xff]
    %359 = vset.pattern.permute.xlu0 0
    %360 = vperm.xlu0 %359, %v350
    %v361 = vpop.permute.xlu0 %360
    %364 = vset.pattern.permute.xlu0 0
    %365 = vperm.xlu0 %364, %v351
    %v366 = vpop.permute.xlu0 %365
    %369 = vset.pattern.permute.xlu0 0
    %370 = vperm.xlu0 %369, %v352
    %v371 = vpop.permute.xlu0 %370
    %374 = vset.pattern.permute.xlu0 0
    %375 = vperm.xlu0 %374, %v353
    %v376 = vpop.permute.xlu0 %375
    %379 = vset.pattern.permute.xlu0 0
    %380 = vperm.xlu0 %379, %v354
    %v381 = vpop.permute.xlu0 %380
    %384 = vset.pattern.permute.xlu0 0
    %385 = vperm.xlu0 %384, %v355
    %v386 = vpop.permute.xlu0 %385
    %389 = vset.pattern.permute.xlu0 0
    %390 = vperm.xlu0 %389, %v356
    %v391 = vpop.permute.xlu0 %390
    %394 = vset.pattern.permute.xlu0 0
    %395 = vperm.xlu0 %394, %v357
    %v396 = vpop.permute.xlu0 %395
    %v398 = vadd.f32 %v320, %v361
    %v399 = vadd.f32 %v323, %v366
    %v400 = vadd.f32 %v328, %v371
    %v401 = vadd.f32 %v331, %v376
    %v402 = vadd.f32 %v336, %v381
    %v403 = vadd.f32 %v339, %v386
    %v404 = vadd.f32 %v344, %v391
    %v405 = vadd.f32 %v347, %v396
    %v406 = vmax.f32 %v398, 0.0
    %v407 = vmax.f32 %v399, 0.0
    %v408 = vmax.f32 %v400, 0.0
    %v409 = vmax.f32 %v401, 0.0
    %v410 = vmax.f32 %v402, 0.0
    %v411 = vmax.f32 %v403, 0.0
    %v412 = vmax.f32 %v404, 0.0
    %v413 = vmax.f32 %v405, 0.0
    %v414 = vld [vmem:[%s5] sm:$0xf]
    %v415 = vld [vmem:[%s5 + $0x4] sm:$0xf]
    %v416 = vld [vmem:[%s5 + $0x8] sm:$0xf]
    %v417 = vld [vmem:[%s5 + $0xc] sm:$0xf]
    %v418 = vld [vmem:[%s5 + $0x10] sm:$0xf]
    %v419 = vld [vmem:[%s5 + $0x14] sm:$0xf]
    %v420 = vld [vmem:[%s5 + $0x18] sm:$0xf]
    %v421 = vld [vmem:[%s5 + $0x1c] sm:$0xf]
    %v422 = vpack.c.bf16 %v407, %v406
    %v423 = vpack.c.bf16 %v409, %v408
    %v424 = vpack.c.bf16 %v411, %v410
    %v425 = vpack.c.bf16 %v413, %v412
    %v426 = vld [vmem:[%s6] sm:$0xff]
    %v427 = vld [vmem:[%s6 + $0x8] sm:$0xff]
    %v428 = vld [vmem:[%s6 + $0x10] sm:$0xff]
    %v429 = vld [vmem:[%s6 + $0x18] sm:$0xff]
    %v430 = vld [vmem:[%s6 + $0x20] sm:$0xff]
    %v431 = vld [vmem:[%s6 + $0x28] sm:$0xff]
    %v432 = vld [vmem:[%s6 + $0x30] sm:$0xff]
    %v433 = vld [vmem:[%s6 + $0x38] sm:$0xff]
    %435 = vset.pattern.permute.xlu0 0
    %436 = vperm.xlu0 %435, %v426
    %v437 = vpop.permute.xlu0 %436
    %440 = vset.pattern.permute.xlu0 0
    %441 = vperm.xlu0 %440, %v427
    %v442 = vpop.permute.xlu0 %441
    %445 = vset.pattern.permute.xlu0 0
    %446 = vperm.xlu0 %445, %v428
    %v447 = vpop.permute.xlu0 %446
    %450 = vset.pattern.permute.xlu0 0
    %451 = vperm.xlu0 %450, %v429
    %v452 = vpop.permute.xlu0 %451
    %455 = vset.pattern.permute.xlu0 0
    %456 = vperm.xlu0 %455, %v430
    %v457 = vpop.permute.xlu0 %456
    %460 = vset.pattern.permute.xlu0 0
    %461 = vperm.xlu0 %460, %v431
    %v462 = vpop.permute.xlu0 %461
    %465 = vset.pattern.permute.xlu0 0
    %466 = vperm.xlu0 %465, %v432
    %v467 = vpop.permute.xlu0 %466
    %470 = vset.pattern.permute.xlu0 0
    %471 = vperm.xlu0 %470, %v433
    %v472 = vpop.permute.xlu0 %471
    %v482 = vunpack.c.l.b16 %v414
    %v483 = vunpack.c.l.b16 %v415
    %v484 = vunpack.c.l.b16 %v416
    %v485 = vunpack.c.l.b16 %v417
    %v486 = vunpack.c.l.b16 %v418
    %v487 = vunpack.c.l.b16 %v419
    %v488 = vunpack.c.l.b16 %v420
    %v489 = vunpack.c.l.b16 %v421
    %v490 = vpack.c.b16 %v483, %v482
    %v491 = vpack.c.b16 %v485, %v484
    %v492 = vpack.c.b16 %v487, %v486
    %v493 = vpack.c.b16 %v489, %v488
    %vm494 = vcmask 523264
    %v496 = vsel %vm494, %v490, 0
    %v499 = vsel %vm494, %v491, 0
    %v502 = vsel %vm494, %v492, 0
    %v505 = vsel %vm494, %v493, 0
    %507 = vmatprep.subr.bf16.mxu0 0
    %508 = vmatpush1.bf16.msra.mxu0 0
    %509 = vmatprep.subr.bf16.mxu0 0
    %510 = vmatpush1.bf16.msra.mxu0 0
    %511 = vmatprep.subr.bf16.mxu0 0
    %512 = vmatpush1.bf16.msra.mxu0 0
    %513 = vmatprep.subr.bf16.mxu0 0
    %514 = vmatpush1.bf16.msra.mxu0 0
    %515 = vmatprep.subr.bf16.mxu0 0
    %516 = vmatpush1.bf16.msra.mxu0 %v425
    %517 = vmatprep.subr.bf16.mxu0 0
    %518 = vmatpush1.bf16.msra.mxu0 %v424
    %519 = vmatprep.subr.bf16.mxu0 0
    %520 = vmatpush1.bf16.msra.mxu0 %v423
    %521 = vmatprep.subr.bf16.mxu0 0
    %522 = vmatpush1.bf16.msra.mxu0 %v422
    %523 = vmatprep.subr.bf16.mxu0 0
    %524 = vmatpush2.bf16.msra.mxu0 0
    %525 = vmatprep.subr.bf16.mxu0 0
    %526 = vmatpush2.bf16.msra.mxu0 0
    %527 = vmatprep.subr.bf16.mxu0 0
    %528 = vmatpush2.bf16.msra.mxu0 0
    %529 = vmatprep.subr.bf16.mxu0 0
    %530 = vmatpush2.bf16.msra.mxu0 0
    %531 = vmatprep.subr.bf16.mxu0 0
    %532 = vmatpush2.bf16.msra.mxu0 0
    %533 = vmatprep.subr.bf16.mxu0 0
    %534 = vmatpush2.bf16.msra.mxu0 0
    %535 = vmatprep.subr.bf16.mxu0 0
    %536 = vmatpush2.bf16.msra.mxu0 0
    %537 = vmatprep.subr.bf16.mxu0 0
    %538 = vmatpush2.bf16.msra.mxu0 0
    %539 = vmatprep.mubr.bf16.mxu0 0
    %540 = vmatmul.mubr.bf16.gmra.mxu0 %v496
    %v541 = vpop.f32.mrf.mxu0
    %v542 = vadd.f32 %v437, %v541
    %v543 = vpop.f32.mrf.mxu0
    %v544 = vpop.f32.mrf.mxu0
    %v545 = vadd.f32 %v442, %v544
    %v546 = vpop.f32.mrf.mxu0
    %547 = vmatprep.mubr.bf16.mxu0 0
    %548 = vmatmul.mubr.bf16.gmra.mxu0 %v499
    %v549 = vpop.f32.mrf.mxu0
    %v550 = vadd.f32 %v447, %v549
    %v551 = vpop.f32.mrf.mxu0
    %v552 = vpop.f32.mrf.mxu0
    %v553 = vadd.f32 %v452, %v552
    %v554 = vpop.f32.mrf.mxu0
    %555 = vmatprep.mubr.bf16.mxu0 0
    %556 = vmatmul.mubr.bf16.gmra.mxu0 %v502
    %v557 = vpop.f32.mrf.mxu0
    %v558 = vadd.f32 %v457, %v557
    %v559 = vpop.f32.mrf.mxu0
    %v560 = vpop.f32.mrf.mxu0
    %v561 = vadd.f32 %v462, %v560
    %v562 = vpop.f32.mrf.mxu0
    %563 = vmatprep.mubr.bf16.mxu0 0
    %564 = vmatmul.mubr.bf16.gmra.mxu0 %v505
    %v565 = vpop.f32.mrf.mxu0
    %v566 = vadd.f32 %v467, %v565
    %v567 = vpop.f32.mrf.mxu0
    %v568 = vpop.f32.mrf.mxu0
    %v569 = vadd.f32 %v472, %v568
    %v570 = vpop.f32.mrf.mxu0
    %571 = vdwg.mxu0
    %v572 = vmax.f32 %v542, 0.0
    %v573 = vmax.f32 %v545, 0.0
    %v574 = vmax.f32 %v550, 0.0
    %v575 = vmax.f32 %v553, 0.0
    %v576 = vmax.f32 %v558, 0.0
    %v577 = vmax.f32 %v561, 0.0
    %v578 = vmax.f32 %v566, 0.0
    %v579 = vmax.f32 %v569, 0.0
    %v580 = vld [vmem:[%s7] sm:$0xf]
    %v581 = vld [vmem:[%s7 + $0x4] sm:$0xf]
    %v582 = vld [vmem:[%s7 + $0x8] sm:$0xf]
    %v583 = vld [vmem:[%s7 + $0xc] sm:$0xf]
    %v584 = vld [vmem:[%s7 + $0x10] sm:$0xf]
    %v585 = vld [vmem:[%s7 + $0x14] sm:$0xf]
    %v586 = vld [vmem:[%s7 + $0x18] sm:$0xf]
    %v587 = vld [vmem:[%s7 + $0x1c] sm:$0xf]
    %v588 = vpack.c.bf16 %v573, %v572
    %v589 = vpack.c.bf16 %v575, %v574
    %v590 = vpack.c.bf16 %v577, %v576
    %v591 = vpack.c.bf16 %v579, %v578
    %v592 = vld [vmem:[%s8] sm:$0xff]
    %v593 = vld [vmem:[%s8 + $0x8] sm:$0xff]
    %v594 = vld [vmem:[%s8 + $0x10] sm:$0xff]
    %v595 = vld [vmem:[%s8 + $0x18] sm:$0xff]
    %v596 = vld [vmem:[%s8 + $0x20] sm:$0xff]
    %v597 = vld [vmem:[%s8 + $0x28] sm:$0xff]
    %v598 = vld [vmem:[%s8 + $0x30] sm:$0xff]
    %v599 = vld [vmem:[%s8 + $0x38] sm:$0xff]
    %601 = vset.pattern.permute.xlu0 0
    %602 = vperm.xlu0 %601, %v592
    %v603 = vpop.permute.xlu0 %602
    %606 = vset.pattern.permute.xlu0 0
    %607 = vperm.xlu0 %606, %v593
    %v608 = vpop.permute.xlu0 %607
    %611 = vset.pattern.permute.xlu0 0
    %612 = vperm.xlu0 %611, %v594
    %v613 = vpop.permute.xlu0 %612
    %616 = vset.pattern.permute.xlu0 0
    %617 = vperm.xlu0 %616, %v595
    %v618 = vpop.permute.xlu0 %617
    %621 = vset.pattern.permute.xlu0 0
    %622 = vperm.xlu0 %621, %v596
    %v623 = vpop.permute.xlu0 %622
    %626 = vset.pattern.permute.xlu0 0
    %627 = vperm.xlu0 %626, %v597
    %v628 = vpop.permute.xlu0 %627
    %631 = vset.pattern.permute.xlu0 0
    %632 = vperm.xlu0 %631, %v598
    %v633 = vpop.permute.xlu0 %632
    %636 = vset.pattern.permute.xlu0 0
    %637 = vperm.xlu0 %636, %v599
    %v638 = vpop.permute.xlu0 %637
    %v648 = vunpack.c.l.b16 %v580
    %v649 = vunpack.c.l.b16 %v581
    %v650 = vunpack.c.l.b16 %v582
    %v651 = vunpack.c.l.b16 %v583
    %v652 = vunpack.c.l.b16 %v584
    %v653 = vunpack.c.l.b16 %v585
    %v654 = vunpack.c.l.b16 %v586
    %v655 = vunpack.c.l.b16 %v587
    %v656 = vpack.c.b16 %v649, %v648
    %v657 = vpack.c.b16 %v651, %v650
    %v658 = vpack.c.b16 %v653, %v652
    %v659 = vpack.c.b16 %v655, %v654
    %v661 = vsel %vm494, %v656, 0
    %v664 = vsel %vm494, %v657, 0
    %v667 = vsel %vm494, %v658, 0
    %v670 = vsel %vm494, %v659, 0
    %672 = vmatprep.subr.bf16.mxu0 0
    %673 = vmatpush1.bf16.msra.mxu0 0
    %674 = vmatprep.subr.bf16.mxu0 0
    %675 = vmatpush1.bf16.msra.mxu0 0
    %676 = vmatprep.subr.bf16.mxu0 0
    %677 = vmatpush1.bf16.msra.mxu0 0
    %678 = vmatprep.subr.bf16.mxu0 0
    %679 = vmatpush1.bf16.msra.mxu0 0
    %680 = vmatprep.subr.bf16.mxu0 0
    %681 = vmatpush1.bf16.msra.mxu0 %v591
    %682 = vmatprep.subr.bf16.mxu0 0
    %683 = vmatpush1.bf16.msra.mxu0 %v590
    %684 = vmatprep.subr.bf16.mxu0 0
    %685 = vmatpush1.bf16.msra.mxu0 %v589
    %686 = vmatprep.subr.bf16.mxu0 0
    %687 = vmatpush1.bf16.msra.mxu0 %v588
    %688 = vmatprep.subr.bf16.mxu0 0
    %689 = vmatpush2.bf16.msra.mxu0 0
    %690 = vmatprep.subr.bf16.mxu0 0
    %691 = vmatpush2.bf16.msra.mxu0 0
    %692 = vmatprep.subr.bf16.mxu0 0
    %693 = vmatpush2.bf16.msra.mxu0 0
    %694 = vmatprep.subr.bf16.mxu0 0
    %695 = vmatpush2.bf16.msra.mxu0 0
    %696 = vmatprep.subr.bf16.mxu0 0
    %697 = vmatpush2.bf16.msra.mxu0 0
    %698 = vmatprep.subr.bf16.mxu0 0
    %699 = vmatpush2.bf16.msra.mxu0 0
    %700 = vmatprep.subr.bf16.mxu0 0
    %701 = vmatpush2.bf16.msra.mxu0 0
    %702 = vmatprep.subr.bf16.mxu0 0
    %703 = vmatpush2.bf16.msra.mxu0 0
    %704 = vmatprep.mubr.bf16.mxu0 0
    %705 = vmatmul.mubr.bf16.gmra.mxu0 %v661
    %v706 = vpop.f32.mrf.mxu0
    %v707 = vadd.f32 %v603, %v706
    %v708 = vpop.f32.mrf.mxu0
    %v709 = vpop.f32.mrf.mxu0
    %v710 = vadd.f32 %v608, %v709
    %v711 = vpop.f32.mrf.mxu0
    %712 = vmatprep.mubr.bf16.mxu0 0
    %713 = vmatmul.mubr.bf16.gmra.mxu0 %v664
    %v714 = vpop.f32.mrf.mxu0
    %v715 = vadd.f32 %v613, %v714
    %v716 = vpop.f32.mrf.mxu0
    %v717 = vpop.f32.mrf.mxu0
    %v718 = vadd.f32 %v618, %v717
    %v719 = vpop.f32.mrf.mxu0
    %720 = vmatprep.mubr.bf16.mxu0 0
    %721 = vmatmul.mubr.bf16.gmra.mxu0 %v667
    %v722 = vpop.f32.mrf.mxu0
    %v723 = vadd.f32 %v623, %v722
    %v724 = vpop.f32.mrf.mxu0
    %v725 = vpop.f32.mrf.mxu0
    %v726 = vadd.f32 %v628, %v725
    %v727 = vpop.f32.mrf.mxu0
    %728 = vmatprep.mubr.bf16.mxu0 0
    %729 = vmatmul.mubr.bf16.gmra.mxu0 %v670
    %v730 = vpop.f32.mrf.mxu0
    %v731 = vadd.f32 %v633, %v730
    %v732 = vpop.f32.mrf.mxu0
    %v733 = vpop.f32.mrf.mxu0
    %v734 = vadd.f32 %v638, %v733
    %v735 = vpop.f32.mrf.mxu0
    %736 = vdwg.mxu0
    %v737 = vmax.f32 %v707, 0.0
    %v738 = vmax.f32 %v710, 0.0
    %v739 = vmax.f32 %v715, 0.0
    %v740 = vmax.f32 %v718, 0.0
    %v741 = vmax.f32 %v723, 0.0
    %v742 = vmax.f32 %v726, 0.0
    %v743 = vmax.f32 %v731, 0.0
    %v744 = vmax.f32 %v734, 0.0
    %v745 = vld [vmem:[%s9] sm:$0x1]
    %v746 = vpack.c.bf16 %v738, %v737
    %v747 = vpack.c.bf16 %v740, %v739
    %v748 = vpack.c.bf16 %v742, %v741
    %v749 = vpack.c.bf16 %v744, %v743
    %v750 = vld [vmem:[#allocation2] sm:$0x1]
    %752 = vset.pattern.permute.xlu0 0
    %753 = vperm.xlu0 %752, %v750
    %v754 = vpop.permute.xlu0 %753
    %v756 = vlaneseq
    %v757 = vshrl.u32 %v756, 7
    %v758 = vsub.s32 0, %v757
    %v759 = vrot.slane %v754, %v758
    %v761 = vsel %vm494, %v745, 0
    %763 = vmatprep.subr.bf16.mxu0 0
    %764 = vmatpush1.bf16.msra.mxu0 0
    %765 = vmatprep.subr.bf16.mxu0 0
    %766 = vmatpush1.bf16.msra.mxu0 0
    %767 = vmatprep.subr.bf16.mxu0 0
    %768 = vmatpush1.bf16.msra.mxu0 0
    %769 = vmatprep.subr.bf16.mxu0 0
    %770 = vmatpush1.bf16.msra.mxu0 0
    %771 = vmatprep.subr.bf16.mxu0 0
    %772 = vmatpush1.bf16.msra.mxu0 %v749
    %773 = vmatprep.subr.bf16.mxu0 0
    %774 = vmatpush1.bf16.msra.mxu0 %v748
    %775 = vmatprep.subr.bf16.mxu0 0
    %776 = vmatpush1.bf16.msra.mxu0 %v747
    %777 = vmatprep.subr.bf16.mxu0 0
    %778 = vmatpush1.bf16.msra.mxu0 %v746
    %779 = vmatprep.subr.bf16.mxu0 0
    %780 = vmatpush2.bf16.msra.mxu0 0
    %781 = vmatprep.subr.bf16.mxu0 0
    %782 = vmatpush2.bf16.msra.mxu0 0
    %783 = vmatprep.subr.bf16.mxu0 0
    %784 = vmatpush2.bf16.msra.mxu0 0
    %785 = vmatprep.subr.bf16.mxu0 0
    %786 = vmatpush2.bf16.msra.mxu0 0
    %787 = vmatprep.subr.bf16.mxu0 0
    %788 = vmatpush2.bf16.msra.mxu0 0
    %789 = vmatprep.subr.bf16.mxu0 0
    %790 = vmatpush2.bf16.msra.mxu0 0
    %791 = vmatprep.subr.bf16.mxu0 0
    %792 = vmatpush2.bf16.msra.mxu0 0
    %793 = vmatprep.subr.bf16.mxu0 0
    %794 = vmatpush2.bf16.msra.mxu0 0
    %795 = vmatprep.mubr.bf16.mxu0 0
    %796 = vmatmul.mubr.bf16.gmra.mxu0 %v761
    %v797 = vpop.f32.mrf.mxu0
    %v798 = vadd.f32 %v759, %v797
    %v799 = vpop.f32.mrf.mxu0
    %v800 = vpop.f32.mrf.mxu0
    %v801 = vpop.f32.mrf.mxu0
    %802 = vdwg.mxu0
    %803 = vst [vmem:[#allocation3] sm:$0x1] %v798
    // Predicated region
    $region46: #{tpu_custom_call.1} parent=1 // pred_check
      _
    $region47: #{tpu_custom_call.1} parent=1 // pred_check_branch
      %805 = sbr.rel (0) target = $region49
    $region48: #{tpu_custom_call.1} parent=1 // pred_region
      %s807 = ssub.s32 16, 16
      %808 = vsyncadd [#allocation4], %s807
      %s810 = sshll.u32 [#allocation3], 4
      %s811 = int_to_ptr.vmem [resolvable:$true] %s810
      %813 = dma.vmem_to_hbm [thread:$0]  %s811, 16, %s11, [#allocation4]
    $region49: #{tpu_custom_call.1} parent=1 // pred_fallthru
      _
    // Predicated region
    $region50: #{tpu_custom_call.1} parent=1 // pred_check
      _
    $region51: #{tpu_custom_call.1} parent=1 // pred_check_branch
      %815 = sbr.rel (0) target = $region53
    $region52: #{tpu_custom_call.1} parent=1 // pred_region
      %816 = dma.done [#allocation4], 16
    $region53: #{tpu_custom_call.1} parent=1 // pred_fallthru
      _
    %817 = vsyncpa [#allocation4], 1

</llo_original>
